<compile_context>
chip_gen: v6e
topology: v6e:2x2x1
jax: 0.10.0
libtpu: 0.0.40
codegen_flags: <defaults>
</compile_context>

<pallas_src>
import jax
import jax.numpy as jnp
import numpy as np
from jax.experimental import pallas as pl
from jax.experimental.pallas import tpu as pltpu

# ---------------- module hyper-parameters (small, synthetic) -----------------
B = 2                 # batch
C = 3                 # in_chans
T = 8                 # num_frames (module default)
H = W = 64            # img_size
P = 16                # patch_size
TS = 1                # tubelet_size
E = 128               # embed_dim

# grid_size = (T//TS, H//P, W//P) = (8, 4, 4)  ->  M = B*8*4*4 = 256, K = 768


def _round_up(x, m):
    return (x + m - 1) // m * m


def _choose_row_tile(m_pad):
    # Bounded row tiling (perf feedback):
    #   * never a single giant (M, K) block,
    #   * 256 rows fills the 256-deep MXU on v6e/v7x when M allows,
    #   * keep >=2 grid steps so megacore sharding / DMA-compute overlap exist.
    if m_pad % 256 == 0 and m_pad // 256 >= 2:
        return 256
    return 128


# ---------------- Pallas kernel ----------------------------------------------
def _patch_embed_kernel(p_ref, w_ref, b_ref, o_ref):
    # (TM, K) bf16 @ (K, E) bf16 -> f32 accumulation on the MXU;
    # bias add in f32 on the VPU; cast to the output dtype at the store.
    acc = jnp.dot(p_ref[...], w_ref[...], preferred_element_type=jnp.float32)
    o_ref[...] = (acc + b_ref[...]).astype(o_ref.dtype)


def patch_embed(x, weight, bias, *, out_dtype=jnp.bfloat16):
    """x: (B, C, T, H, W) f32.  weight: (E, C, TS, P, P) f32 (PyTorch Conv3d
    layout).  bias: (E,) f32.  Returns (B, T', H'*W', E) in `out_dtype`."""
    b, c, t, h, w = x.shape
    e, _, ts, ph, pw = weight.shape
    gt, gh, gw = t // ts, h // ph, w // pw
    m = b * gt * gh * gw                       # fused token rows
    k = c * ts * ph * pw                       # patch length

    # ---- im2col as lazy layout ops (fused into the pallas_call input) -------
    patches = (
        x.reshape(b, c, gt, ts, gh, ph, gw, pw)
         .transpose(0, 2, 4, 6, 1, 3, 5, 7)    # (b, gt, gh, gw, c, ts, ph, pw)
         .reshape(m, k)
         .astype(jnp.bfloat16)
    )
    m_pad = _round_up(m, 128)
    if m_pad != m:
        patches = jnp.pad(patches, ((0, m_pad - m), (0, 0)))
    tm = _choose_row_tile(m_pad)

    w_mat = weight.reshape(e, k).T.astype(jnp.bfloat16)    # (K, E): y = p @ W + b
    b_row = bias.reshape(1, e).astype(jnp.float32)

    cost = pl.CostEstimate(
        flops=2 * m_pad * k * e,
        transcendentals=0,
        bytes_accessed=m_pad * k * 2 + k * e * 2
                       + m_pad * e * jnp.dtype(out_dtype).itemsize,
    )

    out = pl.pallas_call(
        _patch_embed_kernel,
        out_shape=jax.ShapeDtypeStruct((m_pad, e), out_dtype),
        grid_spec=pltpu.PrefetchScalarGridSpec(
            num_scalar_prefetch=0,
            grid=(m_pad // tm,),
            in_specs=[
                pl.BlockSpec((tm, k), lambda i: (i, 0)),
                # Weight / bias are grid-invariant (constant index_map).
                # TODO(synk): for large-K configs on v7x (e.g. P=32/TS=2 ->
                # K=6144), mark these pipeline_mode=pl.Buffered(1) or copy once
                # into VMEM scratch to avoid double-buffering the invariant
                # weight; at K=768 (<0.2 MiB) it is irrelevant, so default kept.
                pl.BlockSpec((k, e), lambda i: (0, 0)),
                pl.BlockSpec((1, e), lambda i: (0, 0)),
            ],
            out_specs=pl.BlockSpec((tm, e), lambda i: (i, 0)),
        ),
        compiler_params=pltpu.CompilerParams(
            dimension_semantics=("parallel",),
            allow_input_fusion=[True, True, True],
        ),
        cost_estimate=cost,
    )(patches, w_mat, b_row)

    out = out[:m]
    # (B*T'*H'*W', E) -> (B, T', H'*W', E)  ==  conv.flatten(3).permute(0,2,3,1)
    return out.reshape(b, gt, gh * gw, e)
    # TODO(synk): `norm_before` / `norm` are nn.Identity in the default config
    # (norm_layer=None, dual_norm_in_patch_embed=False) and are not instantiated.


# ---------------- pure-JAX reference (Conv3d semantics, f32) -----------------
def reference(x, weight, bias):
    b, c, t, h, w = x.shape
    e, _, ts, ph, pw = weight.shape
    out = jax.lax.conv_general_dilated(
        x, weight,
        window_strides=(ts, ph, pw),
        padding="VALID",
        dimension_numbers=("NCDHW", "OIDHW", "NCDHW"),
        precision=jax.lax.Precision.HIGHEST,
    )
    out = out + bias.reshape(1, e, 1, 1, 1)
    out = out.reshape(b, e, t // ts, (h // ph) * (w // pw))   # flatten(3)
    return out.transpose(0, 2, 3, 1)                          # permute(0,2,3,1)


if __name__ == "__main__":
    key = jax.random.PRNGKey(0)
    kx, kw, kb = jax.random.split(key, 3)
    x = jax.random.normal(kx, (B, C, T, H, W), dtype=jnp.float32)
    weight = (0.02 * jax.random.normal(kw, (E, C, TS, P, P))).astype(jnp.float32)
    bias = (0.02 * jax.random.normal(kb, (E,))).astype(jnp.float32)

    run = jax.jit(patch_embed)            # jit so input fusion can take effect
    out = jax.block_until_ready(run(x, weight, bias))

    ref = reference(x, weight, bias)
    # bf16 MXU operands + bf16 output (f32 accumulation) give ~1e-2-level
    # deviation from the f32 conv reference; a layout / patch-ordering bug
    # would be O(1).
    np.testing.assert_allclose(np.asarray(out, dtype=np.float32),
                               np.asarray(ref), rtol=2e-2, atol=2e-2)
    print("KERNEL_OK")
</pallas_src>

<mosaic_0001>
module attributes {stable_mosaic.version = 11 : i64} {
  func.func @_patch_embed_kernel(%arg0: i32, %arg1: memref<128x768xbf16, #tpu.memory_space<vmem>>, %arg2: memref<768x128xbf16, #tpu.memory_space<vmem>>, %arg3: memref<1x128xf32, #tpu.memory_space<vmem>>, %arg4: memref<128x128xbf16, #tpu.memory_space<vmem>>) attributes {dimension_semantics = [#tpu.dimension_semantics<parallel>], iteration_bounds = array<i64: 2>, scalar_prefetch = 0 : i64, scratch_operands = 0 : i64, tpu.core_type = #tpu.core_type<tc>, window_params = [{transform_indices = @transform_0, window_bounds = array<i64: 128, 768>}, {pipeline_mode = #tpu.pipeline_mode<synchronous>, transform_indices = @transform_1, window_bounds = array<i64: 768, 128>}, {pipeline_mode = #tpu.pipeline_mode<synchronous>, transform_indices = @transform_2, window_bounds = array<i64: 1, 128>}, {transform_indices = @transform_3, window_bounds = array<i64: 128, 128>}]} {
    %c0 = arith.constant 0 : index
    %c0_0 = arith.constant 0 : index
    %0 = vector.load %arg1[%c0, %c0_0] : memref<128x768xbf16, #tpu.memory_space<vmem>>, vector<128x768xbf16>
    %c0_1 = arith.constant 0 : index
    %c0_2 = arith.constant 0 : index
    %1 = vector.load %arg2[%c0_1, %c0_2] : memref<768x128xbf16, #tpu.memory_space<vmem>>, vector<768x128xbf16>
    %cst = arith.constant dense<0.000000e+00> : vector<128x128xf32>
    %2 = tpu.matmul %0, %1, %cst {dimension_numbers = #tpu.dot_dimension_numbers<[1], [0], [0], [1], [0, 0, 1, 1], [], []>} : vector<128x768xbf16>, vector<768x128xbf16>, vector<128x128xf32> -> vector<128x128xf32>
    %c0_3 = arith.constant 0 : index
    %c0_4 = arith.constant 0 : index
    %3 = vector.load %arg3[%c0_3, %c0_4] : memref<1x128xf32, #tpu.memory_space<vmem>>, vector<1x128xf32>
    %4 = vector.broadcast %3 : vector<1x128xf32> to vector<128x128xf32>
    %5 = arith.addf %2, %4 : vector<128x128xf32>
    %6 = arith.truncf %5 : vector<128x128xf32> to vector<128x128xbf16>
    %c0_5 = arith.constant 0 : index
    %c0_6 = arith.constant 0 : index
    %7 = vector.load %arg4[%c0_5, %c0_6] : memref<128x128xbf16, #tpu.memory_space<vmem>>, vector<128x128xbf16>
    tpu.vector_store %arg4[%c0_5, %c0_6], %6 {strides = array<i32>} : memref<128x128xbf16, #tpu.memory_space<vmem>>, vector<128x128xbf16>,
    return
  }
  func.func @transform_0(%arg0: i32) -> (i32, i32) {
    %c0_i32 = arith.constant 0 : i32
    %c0_i32_0 = arith.constant 0 : i32
    return %arg0, %c0_i32 : i32, i32
  }
  func.func @transform_1(%arg0: i32) -> (i32, i32) {
    %c0_i32 = arith.constant 0 : i32
    %c0_i32_0 = arith.constant 0 : i32
    %c0_i32_1 = arith.constant 0 : i32
    return %c0_i32, %c0_i32_0 : i32, i32
  }
  func.func @transform_2(%arg0: i32) -> (i32, i32) {
    %c0_i32 = arith.constant 0 : i32
    %c0_i32_0 = arith.constant 0 : i32
    %c0_i32_1 = arith.constant 0 : i32
    return %c0_i32, %c0_i32_0 : i32, i32
  }
  func.func @transform_3(%arg0: i32) -> (i32, i32) {
    %c0_i32 = arith.constant 0 : i32
    %c0_i32_0 = arith.constant 0 : i32
    return %arg0, %c0_i32 : i32, i32
  }
}

</mosaic_0001>

<llo_original>
// kernel: patch_embed.2
$region0: #{patch_embed.2}
  #allocation0 [shape = 'u32[]', space=smem, size = 0x4, offset = 0x4, fixed_abs, tag = 'smem constant byte address 0x4 - core index']
  #allocation1 [shape = 'u32[144,128]{1,0:T(1,128)}', space=vmem, size = 0x12000, scoped, tag = 'internal scratch']
  %s0 = inlined_call_operand.vmem [shape: bf16[256,768], index: 0, kind: input, shape index: {}]
  %s1 = inlined_call_operand.vmem [shape: bf16[768,128], index: 1, kind: input, shape index: {}]
  %s2 = inlined_call_operand.vmem [shape: f32[128], index: 2, kind: input, shape index: {}]
  %s3 = inlined_call_operand.hbm [shape: bf16[256,128], index: 3, kind: output, shape index: {}]
  %s4 = sld [smem:[#allocation0]]
  $region45: #{patch_embed.2} parent=0
    _
  %s6 = ssub.s32 1, %s4
  %s7 = scalar_select 0, %s6, %s4
  $region1: #{patch_embed.2} parent=0
    #allocation2 [shape = 'u8[65536]{0}', space=vmem, size = 0x10000, scoped, tag = 'output window, operand 0']
    #allocation3 [shape = 's32[2]{0}', space=sflag, size = 0x8, scoped, tag = 'scoped memory for patch_embed.2']
    %8 = vsyncpa [#allocation3], 0
    %s9 = scalar_lea.sflag [#allocation3], 1
    %10 = vsyncpa %s9, 0
    loop: start=0, step=1, limit=4
    $region2: #{patch_embed.2} parent=1 // loop_pre_header
      _
    $region3: #{patch_embed.2} parent=1 // loop_header
      %s12 = sphi 0, %s16
      %p13 = scmp.ge.s32.totalorder %s12, 4
      %s22 = sphi 0, %s24
      %s25 = sphi 0, %s22
      %s26 = sphi 0, %s25
      %s42 = sphi 0, %s26
      %s46 = sphi 0, %s46
      %s48 = sphi 0, %s46
      %s49 = sphi 0, %s48
      %s63 = sphi 0, %s49
      %s67 = sphi 0, %s67
      %s69 = sphi 0, %s67
      %s70 = sphi 0, %s69
      %s84 = sphi 0, %s70
      %s90 = sphi 0, %s92
      %s93 = sphi 0, %s90
      %s94 = sphi 0, %s93
      %s110 = sphi 0, %s94
    $region4: #{patch_embed.2} parent=1 // loop_header_branch
      %15 = sbr.rel (%p13) target = $region8
    $region5: #{patch_embed.2} parent=1 // loop_body
      %s17 = ssub.s32 %s12, 1
      %s18 = ssub.s32 %s12, 2
      %s19 = sadd.s32 %s12, 1
      %s20 = ssub.s32 %s12, %s19
      %p21 = scmp.eq.s32.totalorder %s20, 0
      %s23 = sadd.s32 %s22, 1
      %s24 = scalar_select %p21, %s22, %s23
      %p27 = pneg %p21
      %p28 = scmp.eq.s32.totalorder %s12, 1
      %p29 = por %p27, %p28
      %p30 = scmp.ne.s32.totalorder %s22, %s25
      %p31 = scmp.eq.s32.totalorder %s12, 0
      %p32 = por %p30, %p31
      %p33 = scmp.ne.s32.totalorder %s22, %s25
      %p34 = scmp.eq.s32.totalorder %s17, 1
      %p35 = por %p33, %p34
      %p36 = scmp.ne.s32.totalorder %s25, %s26
      %p37 = scmp.eq.s32.totalorder %s17, 0
      %p38 = por %p36, %p37
      %p39 = scmp.ne.s32.totalorder %s25, %s26
      %p40 = scmp.eq.s32.totalorder %s18, 1
      %p41 = por %p39, %p40
      %p43 = scmp.ne.s32.totalorder %s26, %s42
      %p44 = scmp.eq.s32.totalorder %s18, 0
      %p45 = por %p43, %p44
      %s47 = sadd.s32 %s46, 1
      %p50 = scmp.eq.s32.totalorder %s12, 1
      %p51 = scmp.ne.s32.totalorder %s46, %s48
      %p52 = scmp.eq.s32.totalorder %s12, 0
      %p53 = por %p51, %p52
      %p54 = scmp.ne.s32.totalorder %s46, %s48
      %p55 = scmp.eq.s32.totalorder %s17, 1
      %p56 = por %p54, %p55
      %p57 = scmp.ne.s32.totalorder %s48, %s49
      %p58 = scmp.eq.s32.totalorder %s17, 0
      %p59 = por %p57, %p58
      %p60 = scmp.ne.s32.totalorder %s48, %s49
      %p61 = scmp.eq.s32.totalorder %s18, 1
      %p62 = por %p60, %p61
      %p64 = scmp.ne.s32.totalorder %s49, %s63
      %p65 = scmp.eq.s32.totalorder %s18, 0
      %p66 = por %p64, %p65
      %s68 = sadd.s32 %s67, 1
      %p71 = scmp.eq.s32.totalorder %s12, 1
      %p72 = scmp.ne.s32.totalorder %s67, %s69
      %p73 = scmp.eq.s32.totalorder %s12, 0
      %p74 = por %p72, %p73
      %p75 = scmp.ne.s32.totalorder %s67, %s69
      %p76 = scmp.eq.s32.totalorder %s17, 1
      %p77 = por %p75, %p76
      %p78 = scmp.ne.s32.totalorder %s69, %s70
      %p79 = scmp.eq.s32.totalorder %s17, 0
      %p80 = por %p78, %p79
      %p81 = scmp.ne.s32.totalorder %s69, %s70
      %p82 = scmp.eq.s32.totalorder %s18, 1
      %p83 = por %p81, %p82
      %p85 = scmp.ne.s32.totalorder %s70, %s84
      %p86 = scmp.eq.s32.totalorder %s18, 0
      %p87 = por %p85, %p86
      %s88 = ssub.s32 %s12, %s19
      %p89 = scmp.eq.s32.totalorder %s88, 0
      %s91 = sadd.s32 %s90, 1
      %s92 = scalar_select %p89, %s90, %s91
      %p95 = pneg %p89
      %p96 = scmp.eq.s32.totalorder %s12, 1
      %p97 = por %p95, %p96
      %p98 = scmp.ne.s32.totalorder %s90, %s93
      %p99 = scmp.eq.s32.totalorder %s12, 0
      %p100 = por %p98, %p99
      %p101 = scmp.ne.s32.totalorder %s90, %s93
      %p102 = scmp.eq.s32.totalorder %s17, 1
      %p103 = por %p101, %p102
      %p104 = scmp.ne.s32.totalorder %s93, %s94
      %p105 = scmp.eq.s32.totalorder %s17, 0
      %p106 = por %p104, %p105
      %p107 = scmp.ne.s32.totalorder %s93, %s94
      %p108 = scmp.eq.s32.totalorder %s18, 1
      %p109 = por %p107, %p108
      %p111 = scmp.ne.s32.totalorder %s94, %s110
      %p112 = scmp.eq.s32.totalorder %s18, 0
      %p113 = por %p111, %p112
      %p114 = scmp.le.s32.totalorder 1, %s12
      %p115 = scmp.lt.s32.totalorder %s12, 3
      %p116 = pnand %p114, %p115
      %p117 = pneg %p116
      // Predicated region
      $region9: #{patch_embed.2} parent=5 // pred_check
        _
      $region10: #{patch_embed.2} parent=5 // pred_check_branch
        %119 = sbr.rel (%p116) target = $region12
      $region11: #{patch_embed.2} parent=5 // pred_region
        %s120 = ssub.s32 %s12, 1
        // Predicated region
        $region13: #{patch_embed.2} parent=11 // pred_check
          %p121 = pneg %p59
        $region14: #{patch_embed.2} parent=11 // pred_check_branch
          %123 = sbr.rel (%p121) target = $region16
        $region15: #{patch_embed.2} parent=11 // pred_region
          _
        $region16: #{patch_embed.2} parent=11 // pred_fallthru
          _
        // Predicated region
        $region17: #{patch_embed.2} parent=11 // pred_check
          %p124 = pneg %p80
        $region18: #{patch_embed.2} parent=11 // pred_check_branch
          %126 = sbr.rel (%p124) target = $region20
        $region19: #{patch_embed.2} parent=11 // pred_region
          _
        $region20: #{patch_embed.2} parent=11 // pred_fallthru
          _
      $region12: #{patch_embed.2} parent=5 // pred_fallthru
        _
      %p127 = scmp.lt.s32.totalorder %s12, 2
      // Predicated region
      $region21: #{patch_embed.2} parent=5 // pred_check
        %p128 = pneg %p127
      $region22: #{patch_embed.2} parent=5 // pred_check_branch
        %130 = sbr.rel (%p128) target = $region24
      $region23: #{patch_embed.2} parent=5 // pred_region
        // Predicated region
        $region25: #{patch_embed.2} parent=23 // pred_check
          %p131 = pneg %p32
        $region26: #{patch_embed.2} parent=23 // pred_check_branch
          %133 = sbr.rel (%p131) target = $region28
        $region27: #{patch_embed.2} parent=23 // pred_region
          %s134 = smul.u32 16, %s12
          %p135 = scmp.lt.s32.totalorder %s134, 31
          %s136 = scalar_select %p135, %s134, 31
          %s137 = smul.addr %s136, 6
          %s138 = smul.addr %s137, 4
          %s139 = scalar_lea.vmem %s0, %s138
          %s140 = smul.u32 16, %s12
        $region28: #{patch_embed.2} parent=23 // pred_fallthru
          _
      $region24: #{patch_embed.2} parent=5 // pred_fallthru
        _
      %p141 = scmp.le.s32.totalorder 1, %s12
      %p142 = scmp.lt.s32.totalorder %s12, 3
      %p143 = pnand %p141, %p142
      %p144 = pneg %p143
      // Predicated region
      $region29: #{patch_embed.2} parent=5 // pred_check
        _
      $region30: #{patch_embed.2} parent=5 // pred_check_branch
        %146 = sbr.rel (%p143) target = $region32
      $region31: #{patch_embed.2} parent=5 // pred_region
        #allocation4 [shape = 'u8[512]{0}', space=vmem, size = 0x400, dematerialized = true, scoped, tag = 'FusionAdapter Buffer %fusion.1 = f32[1,128]{1,0:T(1,128)} fusion(%param_2.1), kind=kLoop, calls=%fused_computation.2.clone, metadata={op_name="jit(patch_embed)/reshape" stack_frame_id=12}']
        %s147 = ssub.s32 %s12, 1
        %s148 = smul.u32 16, %s17
        %p149 = scmp.lt.s32.totalorder %s148, 31
        %s150 = scalar_select %p149, %s148, 31
        %s151 = smul.addr %s150, 6
        %s152 = smul.addr %s151, 4
        %s153 = scalar_lea.vmem %s0, %s152
        %p154 = pneg %p38
        %p155 = pneg %p35
        %p156 = pneg %p59
        %p157 = pneg %p56
        %p158 = pneg %p80
        %p159 = pneg %p77
        %p160 = pneg %p106
        %p161 = pneg %p103
        %s162 = sand.u32 %s93, 1
        %s163 = scalar_lea.sflag [#allocation3], %s162
        %s164 = sand.u32 %s93, 1
        %s165 = smul.addr %s164, 64
        %s166 = scalar_lea.vmem [#allocation2], %s165
        %s167 = smul.u32 16, %s17
        %p168 = scmp.lt.s32.totalorder %s167, 31
        %s169 = scalar_select %p168, %s167, 31
        %s170 = smul.addr %s169, 6
        %s171 = smul.addr %s170, 4
        %s172 = scalar_lea.vmem %s0, %s171
        %s173 = smul.u32 16, %s17
        %s174 = smul.u32 16, %s17
        %v175 = vld [vmem:[%s2] sm:$0x1]
        %s177 = ssub.s32 2, 1
        %178 = vst [vmem:[#allocation4] sm:%s177] %v175
        %v180 = vld [vmem:[%s172] sm:$0xff]
        %v181 = vld [vmem:[%s172 + $0x8] sm:$0xff]
        %v182 = vld [vmem:[%s172 + $0x10] sm:$0xff]
        %v183 = vld [vmem:[%s172 + $0x18] sm:$0xff]
        %v184 = vld [vmem:[%s172 + $0x20] sm:$0xff]
        %v185 = vld [vmem:[%s172 + $0x28] sm:$0xff]
        %v186 = vld [vmem:[%s172 + $0x30] sm:$0xff]
        %v187 = vld [vmem:[%s172 + $0x38] sm:$0xff]
        %v188 = vld [vmem:[%s172 + $0x40] sm:$0xff]
        %v189 = vld [vmem:[%s172 + $0x48] sm:$0xff]
        %v190 = vld [vmem:[%s172 + $0x50] sm:$0xff]
        %v191 = vld [vmem:[%s172 + $0x58] sm:$0xff]
        %v192 = vld [vmem:[%s172 + $0x60] sm:$0xff]
        %v193 = vld [vmem:[%s172 + $0x68] sm:$0xff]
        %v194 = vld [vmem:[%s172 + $0x70] sm:$0xff]
        %v195 = vld [vmem:[%s172 + $0x78] sm:$0xff]
        %v196 = vld [vmem:[%s172 + $0x80] sm:$0xff]
        %v197 = vld [vmem:[%s172 + $0x88] sm:$0xff]
        %v198 = vld [vmem:[%s172 + $0x90] sm:$0xff]
        %v199 = vld [vmem:[%s172 + $0x98] sm:$0xff]
        %v200 = vld [vmem:[%s172 + $0xa0] sm:$0xff]
        %v201 = vld [vmem:[%s172 + $0xa8] sm:$0xff]
        %v202 = vld [vmem:[%s172 + $0xb0] sm:$0xff]
        %v203 = vld [vmem:[%s172 + $0xb8] sm:$0xff]
        %v204 = vld [vmem:[%s172 + $0xc0] sm:$0xff]
        %v205 = vld [vmem:[%s172 + $0xc8] sm:$0xff]
        %v206 = vld [vmem:[%s172 + $0xd0] sm:$0xff]
        %v207 = vld [vmem:[%s172 + $0xd8] sm:$0xff]
        %v208 = vld [vmem:[%s172 + $0xe0] sm:$0xff]
        %v209 = vld [vmem:[%s172 + $0xe8] sm:$0xff]
        %v210 = vld [vmem:[%s172 + $0xf0] sm:$0xff]
        %v211 = vld [vmem:[%s172 + $0xf8] sm:$0xff]
        %v212 = vld [vmem:[%s172 + $0x100] sm:$0xff]
        %v213 = vld [vmem:[%s172 + $0x108] sm:$0xff]
        %v214 = vld [vmem:[%s172 + $0x110] sm:$0xff]
        %v215 = vld [vmem:[%s172 + $0x118] sm:$0xff]
        %v216 = vld [vmem:[%s172 + $0x120] sm:$0xff]
        %v217 = vld [vmem:[%s172 + $0x128] sm:$0xff]
        %v218 = vld [vmem:[%s172 + $0x130] sm:$0xff]
        %v219 = vld [vmem:[%s172 + $0x138] sm:$0xff]
        %v220 = vld [vmem:[%s172 + $0x140] sm:$0xff]
        %v221 = vld [vmem:[%s172 + $0x148] sm:$0xff]
        %v222 = vld [vmem:[%s172 + $0x150] sm:$0xff]
        %v223 = vld [vmem:[%s172 + $0x158] sm:$0xff]
        %v224 = vld [vmem:[%s172 + $0x160] sm:$0xff]
        %v225 = vld [vmem:[%s172 + $0x168] sm:$0xff]
        %v226 = vld [vmem:[%s172 + $0x170] sm:$0xff]
        %v227 = vld [vmem:[%s172 + $0x178] sm:$0xff]
        %v228 = vld [vmem:[%s1] sm:$0xf]
        %v229 = vld [vmem:[%s1 + $0x4] sm:$0xf]
        %v230 = vld [vmem:[%s1 + $0x8] sm:$0xf]
        %v231 = vld [vmem:[%s1 + $0xc] sm:$0xf]
        %v232 = vld [vmem:[%s1 + $0x10] sm:$0xf]
        %v233 = vld [vmem:[%s1 + $0x14] sm:$0xf]
        %v234 = vld [vmem:[%s1 + $0x18] sm:$0xf]
        %v235 = vld [vmem:[%s1 + $0x1c] sm:$0xf]
        %v236 = vld [vmem:[%s1 + $0x20] sm:$0xf]
        %v237 = vld [vmem:[%s1 + $0x24] sm:$0xf]
        %v238 = vld [vmem:[%s1 + $0x28] sm:$0xf]
        %v239 = vld [vmem:[%s1 + $0x2c] sm:$0xf]
        %v240 = vld [vmem:[%s1 + $0x30] sm:$0xf]
        %v241 = vld [vmem:[%s1 + $0x34] sm:$0xf]
        %v242 = vld [vmem:[%s1 + $0x38] sm:$0xf]
        %v243 = vld [vmem:[%s1 + $0x3c] sm:$0xf]
        %v244 = vld [vmem:[%s1 + $0x40] sm:$0xf]
        %v245 = vld [vmem:[%s1 + $0x44] sm:$0xf]
        %v246 = vld [vmem:[%s1 + $0x48] sm:$0xf]
        %v247 = vld [vmem:[%s1 + $0x4c] sm:$0xf]
        %v248 = vld [vmem:[%s1 + $0x50] sm:$0xf]
        %v249 = vld [vmem:[%s1 + $0x54] sm:$0xf]
        %v250 = vld [vmem:[%s1 + $0x58] sm:$0xf]
        %v251 = vld [vmem:[%s1 + $0x5c] sm:$0xf]
        %v252 = vld [vmem:[%s1 + $0x60] sm:$0xf]
        %v253 = vld [vmem:[%s1 + $0x64] sm:$0xf]
        %v254 = vld [vmem:[%s1 + $0x68] sm:$0xf]
        %v255 = vld [vmem:[%s1 + $0x6c] sm:$0xf]
        %v256 = vld [vmem:[%s1 + $0x70] sm:$0xf]
        %v257 = vld [vmem:[%s1 + $0x74] sm:$0xf]
        %v258 = vld [vmem:[%s1 + $0x78] sm:$0xf]
        %v259 = vld [vmem:[%s1 + $0x7c] sm:$0xf]
        %v260 = vld [vmem:[%s1 + $0x80] sm:$0xf]
        %v261 = vld [vmem:[%s1 + $0x84] sm:$0xf]
        %v262 = vld [vmem:[%s1 + $0x88] sm:$0xf]
        %v263 = vld [vmem:[%s1 + $0x8c] sm:$0xf]
        %v264 = vld [vmem:[%s1 + $0x90] sm:$0xf]
        %v265 = vld [vmem:[%s1 + $0x94] sm:$0xf]
        %v266 = vld [vmem:[%s1 + $0x98] sm:$0xf]
        %v267 = vld [vmem:[%s1 + $0x9c] sm:$0xf]
        %v268 = vld [vmem:[%s1 + $0xa0] sm:$0xf]
        %v269 = vld [vmem:[%s1 + $0xa4] sm:$0xf]
        %v270 = vld [vmem:[%s1 + $0xa8] sm:$0xf]
        %v271 = vld [vmem:[%s1 + $0xac] sm:$0xf]
        %v272 = vld [vmem:[%s1 + $0xb0] sm:$0xf]
        %v273 = vld [vmem:[%s1 + $0xb4] sm:$0xf]
        %v274 = vld [vmem:[%s1 + $0xb8] sm:$0xf]
        %v275 = vld [vmem:[%s1 + $0xbc] sm:$0xf]
        %v276 = vld [vmem:[%s1 + $0xc0] sm:$0xf]
        %v277 = vld [vmem:[%s1 + $0xc4] sm:$0xf]
        %v278 = vld [vmem:[%s1 + $0xc8] sm:$0xf]
        %v279 = vld [vmem:[%s1 + $0xcc] sm:$0xf]
        %v280 = vld [vmem:[%s1 + $0xd0] sm:$0xf]
        %v281 = vld [vmem:[%s1 + $0xd4] sm:$0xf]
        %v282 = vld [vmem:[%s1 + $0xd8] sm:$0xf]
        %v283 = vld [vmem:[%s1 + $0xdc] sm:$0xf]
        %v284 = vld [vmem:[%s1 + $0xe0] sm:$0xf]
        %v285 = vld [vmem:[%s1 + $0xe4] sm:$0xf]
        %v286 = vld [vmem:[%s1 + $0xe8] sm:$0xf]
        %v287 = vld [vmem:[%s1 + $0xec] sm:$0xf]
        %v288 = vld [vmem:[%s1 + $0xf0] sm:$0xf]
        %v289 = vld [vmem:[%s1 + $0xf4] sm:$0xf]
        %v290 = vld [vmem:[%s1 + $0xf8] sm:$0xf]
        %v291 = vld [vmem:[%s1 + $0xfc] sm:$0xf]
        %v292 = vld [vmem:[%s1 + $0x100] sm:$0xf]
        %v293 = vld [vmem:[%s1 + $0x104] sm:$0xf]
        %v294 = vld [vmem:[%s1 + $0x108] sm:$0xf]
        %v295 = vld [vmem:[%s1 + $0x10c] sm:$0xf]
        %v296 = vld [vmem:[%s1 + $0x110] sm:$0xf]
        %v297 = vld [vmem:[%s1 + $0x114] sm:$0xf]
        %v298 = vld [vmem:[%s1 + $0x118] sm:$0xf]
        %v299 = vld [vmem:[%s1 + $0x11c] sm:$0xf]
        %v300 = vld [vmem:[%s1 + $0x120] sm:$0xf]
        %v301 = vld [vmem:[%s1 + $0x124] sm:$0xf]
        %v302 = vld [vmem:[%s1 + $0x128] sm:$0xf]
        %v303 = vld [vmem:[%s1 + $0x12c] sm:$0xf]
        %v304 = vld [vmem:[%s1 + $0x130] sm:$0xf]
        %v305 = vld [vmem:[%s1 + $0x134] sm:$0xf]
        %v306 = vld [vmem:[%s1 + $0x138] sm:$0xf]
        %v307 = vld [vmem:[%s1 + $0x13c] sm:$0xf]
        %v308 = vld [vmem:[%s1 + $0x140] sm:$0xf]
        %v309 = vld [vmem:[%s1 + $0x144] sm:$0xf]
        %v310 = vld [vmem:[%s1 + $0x148] sm:$0xf]
        %v311 = vld [vmem:[%s1 + $0x14c] sm:$0xf]
        %v312 = vld [vmem:[%s1 + $0x150] sm:$0xf]
        %v313 = vld [vmem:[%s1 + $0x154] sm:$0xf]
        %v314 = vld [vmem:[%s1 + $0x158] sm:$0xf]
        %v315 = vld [vmem:[%s1 + $0x15c] sm:$0xf]
        %v316 = vld [vmem:[%s1 + $0x160] sm:$0xf]
        %v317 = vld [vmem:[%s1 + $0x164] sm:$0xf]
        %v318 = vld [vmem:[%s1 + $0x168] sm:$0xf]
        %v319 = vld [vmem:[%s1 + $0x16c] sm:$0xf]
        %v320 = vld [vmem:[%s1 + $0x170] sm:$0xf]
        %v321 = vld [vmem:[%s1 + $0x174] sm:$0xf]
        %v322 = vld [vmem:[%s1 + $0x178] sm:$0xf]
        %v323 = vld [vmem:[%s1 + $0x17c] sm:$0xf]
        %v324 = vld [vmem:[#allocation4] sm:$0x1]
        %v326 = vlaneseq
        %v327 = vshrl.u32 %v326, 7
        %v328 = vsub.s32 0, %v327
        %v329 = vrot.slane %v324, %v328
        %v379 = vunpack.c.l.b16 %v180
        %v380 = vunpack.c.h.b16 %v180
        %v381 = vunpack.c.l.b16 %v181
        %v382 = vunpack.c.h.b16 %v181
        %v383 = vunpack.c.l.b16 %v182
        %v384 = vunpack.c.h.b16 %v182
        %v385 = vunpack.c.l.b16 %v183
        %v386 = vunpack.c.h.b16 %v183
        %v387 = vunpack.c.l.b16 %v184
        %v388 = vunpack.c.h.b16 %v184
        %v389 = vunpack.c.l.b16 %v185
        %v390 = vunpack.c.h.b16 %v185
        %v391 = vunpack.c.l.b16 %v186
        %v392 = vunpack.c.h.b16 %v186
        %v393 = vunpack.c.l.b16 %v187
        %v394 = vunpack.c.h.b16 %v187
        %v395 = vunpack.c.l.b16 %v188
        %v396 = vunpack.c.h.b16 %v188
        %v397 = vunpack.c.l.b16 %v189
        %v398 = vunpack.c.h.b16 %v189
        %v399 = vunpack.c.l.b16 %v190
        %v400 = vunpack.c.h.b16 %v190
        %v401 = vunpack.c.l.b16 %v191
        %v402 = vunpack.c.h.b16 %v191
        %v403 = vunpack.c.l.b16 %v192
        %v404 = vunpack.c.h.b16 %v192
        %v405 = vunpack.c.l.b16 %v193
        %v406 = vunpack.c.h.b16 %v193
        %v407 = vunpack.c.l.b16 %v194
        %v408 = vunpack.c.h.b16 %v194
        %v409 = vunpack.c.l.b16 %v195
        %v410 = vunpack.c.h.b16 %v195
        %v411 = vunpack.c.l.b16 %v196
        %v412 = vunpack.c.h.b16 %v196
        %v413 = vunpack.c.l.b16 %v197
        %v414 = vunpack.c.h.b16 %v197
        %v415 = vunpack.c.l.b16 %v198
        %v416 = vunpack.c.h.b16 %v198
        %v417 = vunpack.c.l.b16 %v199
        %v418 = vunpack.c.h.b16 %v199
        %v419 = vunpack.c.l.b16 %v200
        %v420 = vunpack.c.h.b16 %v200
        %v421 = vunpack.c.l.b16 %v201
        %v422 = vunpack.c.h.b16 %v201
        %v423 = vunpack.c.l.b16 %v202
        %v424 = vunpack.c.h.b16 %v202
        %v425 = vunpack.c.l.b16 %v203
        %v426 = vunpack.c.h.b16 %v203
        %v427 = vunpack.c.l.b16 %v204
        %v428 = vunpack.c.h.b16 %v204
        %v429 = vunpack.c.l.b16 %v205
        %v430 = vunpack.c.h.b16 %v205
        %v431 = vunpack.c.l.b16 %v206
        %v432 = vunpack.c.h.b16 %v206
        %v433 = vunpack.c.l.b16 %v207
        %v434 = vunpack.c.h.b16 %v207
        %v435 = vunpack.c.l.b16 %v208
        %v436 = vunpack.c.h.b16 %v208
        %v437 = vunpack.c.l.b16 %v209
        %v438 = vunpack.c.h.b16 %v209
        %v439 = vunpack.c.l.b16 %v210
        %v440 = vunpack.c.h.b16 %v210
        %v441 = vunpack.c.l.b16 %v211
        %v442 = vunpack.c.h.b16 %v211
        %v443 = vunpack.c.l.b16 %v212
        %v444 = vunpack.c.h.b16 %v212
        %v445 = vunpack.c.l.b16 %v213
        %v446 = vunpack.c.h.b16 %v213
        %v447 = vunpack.c.l.b16 %v214
        %v448 = vunpack.c.h.b16 %v214
        %v449 = vunpack.c.l.b16 %v215
        %v450 = vunpack.c.h.b16 %v215
        %v451 = vunpack.c.l.b16 %v216
        %v452 = vunpack.c.h.b16 %v216
        %v453 = vunpack.c.l.b16 %v217
        %v454 = vunpack.c.h.b16 %v217
        %v455 = vunpack.c.l.b16 %v218
        %v456 = vunpack.c.h.b16 %v218
        %v457 = vunpack.c.l.b16 %v219
        %v458 = vunpack.c.h.b16 %v219
        %v459 = vunpack.c.l.b16 %v220
        %v460 = vunpack.c.h.b16 %v220
        %v461 = vunpack.c.l.b16 %v221
        %v462 = vunpack.c.h.b16 %v221
        %v463 = vunpack.c.l.b16 %v222
        %v464 = vunpack.c.h.b16 %v222
        %v465 = vunpack.c.l.b16 %v223
        %v466 = vunpack.c.h.b16 %v223
        %v467 = vunpack.c.l.b16 %v224
        %v468 = vunpack.c.h.b16 %v224
        %v469 = vunpack.c.l.b16 %v225
        %v470 = vunpack.c.h.b16 %v225
        %v471 = vunpack.c.l.b16 %v226
        %v472 = vunpack.c.h.b16 %v226
        %v473 = vunpack.c.l.b16 %v227
        %v474 = vunpack.c.h.b16 %v227
        %v475 = vpack.c.b16 %v385, %v379
        %v476 = vpack.c.b16 %v386, %v380
        %v477 = vpack.c.b16 %v387, %v381
        %v478 = vpack.c.b16 %v388, %v382
        %v479 = vpack.c.b16 %v389, %v383
        %v480 = vpack.c.b16 %v390, %v384
        %v481 = vpack.c.b16 %v397, %v391
        %v482 = vpack.c.b16 %v398, %v392
        %v483 = vpack.c.b16 %v399, %v393
        %v484 = vpack.c.b16 %v400, %v394
        %v485 = vpack.c.b16 %v401, %v395
        %v486 = vpack.c.b16 %v402, %v396
        %v487 = vpack.c.b16 %v409, %v403
        %v488 = vpack.c.b16 %v410, %v404
        %v489 = vpack.c.b16 %v411, %v405
        %v490 = vpack.c.b16 %v412, %v406
        %v491 = vpack.c.b16 %v413, %v407
        %v492 = vpack.c.b16 %v414, %v408
        %v493 = vpack.c.b16 %v421, %v415
        %v494 = vpack.c.b16 %v422, %v416
        %v495 = vpack.c.b16 %v423, %v417
        %v496 = vpack.c.b16 %v424, %v418
        %v497 = vpack.c.b16 %v425, %v419
        %v498 = vpack.c.b16 %v426, %v420
        %v499 = vpack.c.b16 %v433, %v427
        %v500 = vpack.c.b16 %v434, %v428
        %v501 = vpack.c.b16 %v435, %v429
        %v502 = vpack.c.b16 %v436, %v430
        %v503 = vpack.c.b16 %v437, %v431
        %v504 = vpack.c.b16 %v438, %v432
        %v505 = vpack.c.b16 %v445, %v439
        %v506 = vpack.c.b16 %v446, %v440
        %v507 = vpack.c.b16 %v447, %v441
        %v508 = vpack.c.b16 %v448, %v442
        %v509 = vpack.c.b16 %v449, %v443
        %v510 = vpack.c.b16 %v450, %v444
        %v511 = vpack.c.b16 %v457, %v451
        %v512 = vpack.c.b16 %v458, %v452
        %v513 = vpack.c.b16 %v459, %v453
        %v514 = vpack.c.b16 %v460, %v454
        %v515 = vpack.c.b16 %v461, %v455
        %v516 = vpack.c.b16 %v462, %v456
        %v517 = vpack.c.b16 %v469, %v463
        %v518 = vpack.c.b16 %v470, %v464
        %v519 = vpack.c.b16 %v471, %v465
        %v520 = vpack.c.b16 %v472, %v466
        %v521 = vpack.c.b16 %v473, %v467
        %v522 = vpack.c.b16 %v474, %v468
        %v667 = vunpack.c.l.b16 %v228
        %v668 = vunpack.c.l.b16 %v229
        %v669 = vunpack.c.l.b16 %v230
        %v670 = vunpack.c.l.b16 %v231
        %v671 = vunpack.c.l.b16 %v232
        %v672 = vunpack.c.l.b16 %v233
        %v673 = vunpack.c.l.b16 %v234
        %v674 = vunpack.c.l.b16 %v235
        %v675 = vunpack.c.l.b16 %v236
        %v676 = vunpack.c.l.b16 %v237
        %v677 = vunpack.c.l.b16 %v238
        %v678 = vunpack.c.l.b16 %v239
        %v679 = vunpack.c.l.b16 %v240
        %v680 = vunpack.c.l.b16 %v241
        %v681 = vunpack.c.l.b16 %v242
        %v682 = vunpack.c.l.b16 %v243
        %v683 = vunpack.c.l.b16 %v244
        %v684 = vunpack.c.l.b16 %v245
        %v685 = vunpack.c.l.b16 %v246
        %v686 = vunpack.c.l.b16 %v247
        %v687 = vunpack.c.l.b16 %v248
        %v688 = vunpack.c.l.b16 %v249
        %v689 = vunpack.c.l.b16 %v250
        %v690 = vunpack.c.l.b16 %v251
        %v691 = vunpack.c.l.b16 %v252
        %v692 = vunpack.c.l.b16 %v253
        %v693 = vunpack.c.l.b16 %v254
        %v694 = vunpack.c.l.b16 %v255
        %v695 = vunpack.c.l.b16 %v256
        %v696 = vunpack.c.l.b16 %v257
        %v697 = vunpack.c.l.b16 %v258
        %v698 = vunpack.c.l.b16 %v259
        %v699 = vunpack.c.l.b16 %v260
        %v700 = vunpack.c.l.b16 %v261
        %v701 = vunpack.c.l.b16 %v262
        %v702 = vunpack.c.l.b16 %v263
        %v703 = vunpack.c.l.b16 %v264
        %v704 = vunpack.c.l.b16 %v265
        %v705 = vunpack.c.l.b16 %v266
        %v706 = vunpack.c.l.b16 %v267
        %v707 = vunpack.c.l.b16 %v268
        %v708 = vunpack.c.l.b16 %v269
        %v709 = vunpack.c.l.b16 %v270
        %v710 = vunpack.c.l.b16 %v271
        %v711 = vunpack.c.l.b16 %v272
        %v712 = vunpack.c.l.b16 %v273
        %v713 = vunpack.c.l.b16 %v274
        %v714 = vunpack.c.l.b16 %v275
        %v715 = vunpack.c.l.b16 %v276
        %v716 = vunpack.c.l.b16 %v277
        %v717 = vunpack.c.l.b16 %v278
        %v718 = vunpack.c.l.b16 %v279
        %v719 = vunpack.c.l.b16 %v280
        %v720 = vunpack.c.l.b16 %v281
        %v721 = vunpack.c.l.b16 %v282
        %v722 = vunpack.c.l.b16 %v283
        %v723 = vunpack.c.l.b16 %v284
        %v724 = vunpack.c.l.b16 %v285
        %v725 = vunpack.c.l.b16 %v286
        %v726 = vunpack.c.l.b16 %v287
        %v727 = vunpack.c.l.b16 %v288
        %v728 = vunpack.c.l.b16 %v289
        %v729 = vunpack.c.l.b16 %v290
        %v730 = vunpack.c.l.b16 %v291
        %v731 = vunpack.c.l.b16 %v292
        %v732 = vunpack.c.l.b16 %v293
        %v733 = vunpack.c.l.b16 %v294
        %v734 = vunpack.c.l.b16 %v295
        %v735 = vunpack.c.l.b16 %v296
        %v736 = vunpack.c.l.b16 %v297
        %v737 = vunpack.c.l.b16 %v298
        %v738 = vunpack.c.l.b16 %v299
        %v739 = vunpack.c.l.b16 %v300
        %v740 = vunpack.c.l.b16 %v301
        %v741 = vunpack.c.l.b16 %v302
        %v742 = vunpack.c.l.b16 %v303
        %v743 = vunpack.c.l.b16 %v304
        %v744 = vunpack.c.l.b16 %v305
        %v745 = vunpack.c.l.b16 %v306
        %v746 = vunpack.c.l.b16 %v307
        %v747 = vunpack.c.l.b16 %v308
        %v748 = vunpack.c.l.b16 %v309
        %v749 = vunpack.c.l.b16 %v310
        %v750 = vunpack.c.l.b16 %v311
        %v751 = vunpack.c.l.b16 %v312
        %v752 = vunpack.c.l.b16 %v313
        %v753 = vunpack.c.l.b16 %v314
        %v754 = vunpack.c.l.b16 %v315
        %v755 = vunpack.c.l.b16 %v316
        %v756 = vunpack.c.l.b16 %v317
        %v757 = vunpack.c.l.b16 %v318
        %v758 = vunpack.c.l.b16 %v319
        %v759 = vunpack.c.l.b16 %v320
        %v760 = vunpack.c.l.b16 %v321
        %v761 = vunpack.c.l.b16 %v322
        %v762 = vunpack.c.l.b16 %v323
        %v763 = vpack.c.b16 %v668, %v667
        %v764 = vpack.c.b16 %v670, %v669
        %v765 = vpack.c.b16 %v672, %v671
        %v766 = vpack.c.b16 %v674, %v673
        %v767 = vpack.c.b16 %v676, %v675
        %v768 = vpack.c.b16 %v678, %v677
        %v769 = vpack.c.b16 %v680, %v679
        %v770 = vpack.c.b16 %v682, %v681
        %v771 = vpack.c.b16 %v684, %v683
        %v772 = vpack.c.b16 %v686, %v685
        %v773 = vpack.c.b16 %v688, %v687
        %v774 = vpack.c.b16 %v690, %v689
        %v775 = vpack.c.b16 %v692, %v691
        %v776 = vpack.c.b16 %v694, %v693
        %v777 = vpack.c.b16 %v696, %v695
        %v778 = vpack.c.b16 %v698, %v697
        %v779 = vpack.c.b16 %v700, %v699
        %v780 = vpack.c.b16 %v702, %v701
        %v781 = vpack.c.b16 %v704, %v703
        %v782 = vpack.c.b16 %v706, %v705
        %v783 = vpack.c.b16 %v708, %v707
        %v784 = vpack.c.b16 %v710, %v709
        %v785 = vpack.c.b16 %v712, %v711
        %v786 = vpack.c.b16 %v714, %v713
        %v787 = vpack.c.b16 %v716, %v715
        %v788 = vpack.c.b16 %v718, %v717
        %v789 = vpack.c.b16 %v720, %v719
        %v790 = vpack.c.b16 %v722, %v721
        %v791 = vpack.c.b16 %v724, %v723
        %v792 = vpack.c.b16 %v726, %v725
        %v793 = vpack.c.b16 %v728, %v727
        %v794 = vpack.c.b16 %v730, %v729
        %v795 = vpack.c.b16 %v732, %v731
        %v796 = vpack.c.b16 %v734, %v733
        %v797 = vpack.c.b16 %v736, %v735
        %v798 = vpack.c.b16 %v738, %v737
        %v799 = vpack.c.b16 %v740, %v739
        %v800 = vpack.c.b16 %v742, %v741
        %v801 = vpack.c.b16 %v744, %v743
        %v802 = vpack.c.b16 %v746, %v745
        %v803 = vpack.c.b16 %v748, %v747
        %v804 = vpack.c.b16 %v750, %v749
        %v805 = vpack.c.b16 %v752, %v751
        %v806 = vpack.c.b16 %v754, %v753
        %v807 = vpack.c.b16 %v756, %v755
        %v808 = vpack.c.b16 %v758, %v757
        %v809 = vpack.c.b16 %v760, %v759
        %v810 = vpack.c.b16 %v762, %v761
        %859 = vmatprep.subr.bf16.mxu0 0
        %860 = vmatpush1.bf16.msra.mxu0 %v770
        %861 = vmatprep.subr.bf16.mxu0 0
        %862 = vmatpush1.bf16.msra.mxu0 %v769
        %863 = vmatprep.subr.bf16.mxu0 0
        %864 = vmatpush1.bf16.msra.mxu0 %v768
        %865 = vmatprep.subr.bf16.mxu0 0
        %866 = vmatpush1.bf16.msra.mxu0 %v767
        %867 = vmatprep.subr.bf16.mxu0 0
        %868 = vmatpush1.bf16.msra.mxu0 %v766
        %869 = vmatprep.subr.bf16.mxu0 0
        %870 = vmatpush1.bf16.msra.mxu0 %v765
        %871 = vmatprep.subr.bf16.mxu0 0
        %872 = vmatpush1.bf16.msra.mxu0 %v764
        %873 = vmatprep.subr.bf16.mxu0 0
        %874 = vmatpush1.bf16.msra.mxu0 %v763
        %875 = vmatprep.subr.bf16.mxu0 0
        %876 = vmatpush2.bf16.msra.mxu0 %v778
        %877 = vmatprep.subr.bf16.mxu0 0
        %878 = vmatpush2.bf16.msra.mxu0 %v777
        %879 = vmatprep.subr.bf16.mxu0 0
        %880 = vmatpush2.bf16.msra.mxu0 %v776
        %881 = vmatprep.subr.bf16.mxu0 0
        %882 = vmatpush2.bf16.msra.mxu0 %v775
        %883 = vmatprep.subr.bf16.mxu0 0
        %884 = vmatpush2.bf16.msra.mxu0 %v774
        %885 = vmatprep.subr.bf16.mxu0 0
        %886 = vmatpush2.bf16.msra.mxu0 %v773
        %887 = vmatprep.subr.bf16.mxu0 0
        %888 = vmatpush2.bf16.msra.mxu0 %v772
        %889 = vmatprep.subr.bf16.mxu0 0
        %890 = vmatpush2.bf16.msra.mxu0 %v771
        %891 = vmatprep.mubr.bf16.mxu0 %v476
        %892 = vmatmul.mubr.bf16.gmra.mxu0 %v475
        %v893 = vpop.f32.mrf.mxu0
        %v894 = vadd.f32 %v329, %v893
        %v895 = vpop.f32.mrf.mxu0
        %v896 = vpop.f32.mrf.mxu0
        %v897 = vadd.f32 %v329, %v896
        %v898 = vpop.f32.mrf.mxu0
        %899 = vmatprep.mubr.bf16.mxu0 %v482
        %900 = vmatmul.mubr.bf16.gmra.mxu0 %v481
        %v901 = vpop.f32.mrf.mxu0
        %v902 = vadd.f32 %v329, %v901
        %v903 = vpop.f32.mrf.mxu0
        %v904 = vpop.f32.mrf.mxu0
        %v905 = vadd.f32 %v329, %v904
        %v906 = vpop.f32.mrf.mxu0
        %907 = vmatprep.mubr.bf16.mxu0 %v488
        %908 = vmatmul.mubr.bf16.gmra.mxu0 %v487
        %v909 = vpop.f32.mrf.mxu0
        %v910 = vadd.f32 %v329, %v909
        %v911 = vpop.f32.mrf.mxu0
        %v912 = vpop.f32.mrf.mxu0
        %v913 = vadd.f32 %v329, %v912
        %v914 = vpop.f32.mrf.mxu0
        %915 = vmatprep.mubr.bf16.mxu0 %v494
        %916 = vmatmul.mubr.bf16.gmra.mxu0 %v493
        %v917 = vpop.f32.mrf.mxu0
        %v918 = vadd.f32 %v329, %v917
        %v919 = vpop.f32.mrf.mxu0
        %v920 = vpop.f32.mrf.mxu0
        %v921 = vadd.f32 %v329, %v920
        %v922 = vpop.f32.mrf.mxu0
        %923 = vmatprep.mubr.bf16.mxu0 %v500
        %924 = vmatmul.mubr.bf16.gmra.mxu0 %v499
        %v925 = vpop.f32.mrf.mxu0
        %v926 = vadd.f32 %v329, %v925
        %v927 = vpop.f32.mrf.mxu0
        %v928 = vpop.f32.mrf.mxu0
        %v929 = vadd.f32 %v329, %v928
        %v930 = vpop.f32.mrf.mxu0
        %931 = vmatprep.mubr.bf16.mxu0 %v506
        %932 = vmatmul.mubr.bf16.gmra.mxu0 %v505
        %v933 = vpop.f32.mrf.mxu0
        %v934 = vadd.f32 %v329, %v933
        %v935 = vpop.f32.mrf.mxu0
        %v936 = vpop.f32.mrf.mxu0
        %v937 = vadd.f32 %v329, %v936
        %v938 = vpop.f32.mrf.mxu0
        %939 = vmatprep.mubr.bf16.mxu0 %v512
        %940 = vmatmul.mubr.bf16.gmra.mxu0 %v511
        %v941 = vpop.f32.mrf.mxu0
        %v942 = vadd.f32 %v329, %v941
        %v943 = vpop.f32.mrf.mxu0
        %v944 = vpop.f32.mrf.mxu0
        %v945 = vadd.f32 %v329, %v944
        %v946 = vpop.f32.mrf.mxu0
        %947 = vmatprep.mubr.bf16.mxu0 %v518
        %948 = vmatmul.mubr.bf16.gmra.mxu0 %v517
        %v949 = vpop.f32.mrf.mxu0
        %v950 = vadd.f32 %v329, %v949
        %v951 = vpop.f32.mrf.mxu0
        %v952 = vpop.f32.mrf.mxu0
        %v953 = vadd.f32 %v329, %v952
        %v954 = vpop.f32.mrf.mxu0
        %955 = vdwg.mxu0
        %956 = vmatprep.subr.bf16.mxu0 0
        %957 = vmatpush1.bf16.msra.mxu0 %v786
        %958 = vmatprep.subr.bf16.mxu0 0
        %959 = vmatpush1.bf16.msra.mxu0 %v785
        %960 = vmatprep.subr.bf16.mxu0 0
        %961 = vmatpush1.bf16.msra.mxu0 %v784
        %962 = vmatprep.subr.bf16.mxu0 0
        %963 = vmatpush1.bf16.msra.mxu0 %v783
        %964 = vmatprep.subr.bf16.mxu0 0
        %965 = vmatpush1.bf16.msra.mxu0 %v782
        %966 = vmatprep.subr.bf16.mxu0 0
        %967 = vmatpush1.bf16.msra.mxu0 %v781
        %968 = vmatprep.subr.bf16.mxu0 0
        %969 = vmatpush1.bf16.msra.mxu0 %v780
        %970 = vmatprep.subr.bf16.mxu0 0
        %971 = vmatpush1.bf16.msra.mxu0 %v779
        %972 = vmatprep.subr.bf16.mxu0 0
        %973 = vmatpush2.bf16.msra.mxu0 %v794
        %974 = vmatprep.subr.bf16.mxu0 0
        %975 = vmatpush2.bf16.msra.mxu0 %v793
        %976 = vmatprep.subr.bf16.mxu0 0
        %977 = vmatpush2.bf16.msra.mxu0 %v792
        %978 = vmatprep.subr.bf16.mxu0 0
        %979 = vmatpush2.bf16.msra.mxu0 %v791
        %980 = vmatprep.subr.bf16.mxu0 0
        %981 = vmatpush2.bf16.msra.mxu0 %v790
        %982 = vmatprep.subr.bf16.mxu0 0
        %983 = vmatpush2.bf16.msra.mxu0 %v789
        %984 = vmatprep.subr.bf16.mxu0 0
        %985 = vmatpush2.bf16.msra.mxu0 %v788
        %986 = vmatprep.subr.bf16.mxu0 0
        %987 = vmatpush2.bf16.msra.mxu0 %v787
        %988 = vmatprep.mubr.bf16.mxu0 %v478
        %989 = vmatmul.mubr.bf16.gmra.mxu0 %v477
        %v990 = vpop.f32.mrf.mxu0
        %v991 = vadd.f32 %v894, %v990
        %v992 = vpop.f32.mrf.mxu0
        %v993 = vpop.f32.mrf.mxu0
        %v994 = vadd.f32 %v897, %v993
        %v995 = vpop.f32.mrf.mxu0
        %996 = vmatprep.mubr.bf16.mxu0 %v484
        %997 = vmatmul.mubr.bf16.gmra.mxu0 %v483
        %v998 = vpop.f32.mrf.mxu0
        %v999 = vadd.f32 %v902, %v998
        %v1000 = vpop.f32.mrf.mxu0
        %v1001 = vpop.f32.mrf.mxu0
        %v1002 = vadd.f32 %v905, %v1001
        %v1003 = vpop.f32.mrf.mxu0
        %1004 = vmatprep.mubr.bf16.mxu0 %v490
        %1005 = vmatmul.mubr.bf16.gmra.mxu0 %v489
        %v1006 = vpop.f32.mrf.mxu0
        %v1007 = vadd.f32 %v910, %v1006
        %v1008 = vpop.f32.mrf.mxu0
        %v1009 = vpop.f32.mrf.mxu0
        %v1010 = vadd.f32 %v913, %v1009
        %v1011 = vpop.f32.mrf.mxu0
        %1012 = vmatprep.mubr.bf16.mxu0 %v496
        %1013 = vmatmul.mubr.bf16.gmra.mxu0 %v495
        %v1014 = vpop.f32.mrf.mxu0
        %v1015 = vadd.f32 %v918, %v1014
        %v1016 = vpop.f32.mrf.mxu0
        %v1017 = vpop.f32.mrf.mxu0
        %v1018 = vadd.f32 %v921, %v1017
        %v1019 = vpop.f32.mrf.mxu0
        %1020 = vmatprep.mubr.bf16.mxu0 %v502
        %1021 = vmatmul.mubr.bf16.gmra.mxu0 %v501
        %v1022 = vpop.f32.mrf.mxu0
        %v1023 = vadd.f32 %v926, %v1022
        %v1024 = vpop.f32.mrf.mxu0
        %v1025 = vpop.f32.mrf.mxu0
        %v1026 = vadd.f32 %v929, %v1025
        %v1027 = vpop.f32.mrf.mxu0
        %1028 = vmatprep.mubr.bf16.mxu0 %v508
        %1029 = vmatmul.mubr.bf16.gmra.mxu0 %v507
        %v1030 = vpop.f32.mrf.mxu0
        %v1031 = vadd.f32 %v934, %v1030
        %v1032 = vpop.f32.mrf.mxu0
        %v1033 = vpop.f32.mrf.mxu0
        %v1034 = vadd.f32 %v937, %v1033
        %v1035 = vpop.f32.mrf.mxu0
        %1036 = vmatprep.mubr.bf16.mxu0 %v514
        %1037 = vmatmul.mubr.bf16.gmra.mxu0 %v513
        %v1038 = vpop.f32.mrf.mxu0
        %v1039 = vadd.f32 %v942, %v1038
        %v1040 = vpop.f32.mrf.mxu0
        %v1041 = vpop.f32.mrf.mxu0
        %v1042 = vadd.f32 %v945, %v1041
        %v1043 = vpop.f32.mrf.mxu0
        %1044 = vmatprep.mubr.bf16.mxu0 %v520
        %1045 = vmatmul.mubr.bf16.gmra.mxu0 %v519
        %v1046 = vpop.f32.mrf.mxu0
        %v1047 = vadd.f32 %v950, %v1046
        %v1048 = vpop.f32.mrf.mxu0
        %v1049 = vpop.f32.mrf.mxu0
        %v1050 = vadd.f32 %v953, %v1049
        %v1051 = vpop.f32.mrf.mxu0
        %1052 = vdwg.mxu0
        %1053 = vmatprep.subr.bf16.mxu0 0
        %1054 = vmatpush1.bf16.msra.mxu0 %v802
        %1055 = vmatprep.subr.bf16.mxu0 0
        %1056 = vmatpush1.bf16.msra.mxu0 %v801
        %1057 = vmatprep.subr.bf16.mxu0 0
        %1058 = vmatpush1.bf16.msra.mxu0 %v800
        %1059 = vmatprep.subr.bf16.mxu0 0
        %1060 = vmatpush1.bf16.msra.mxu0 %v799
        %1061 = vmatprep.subr.bf16.mxu0 0
        %1062 = vmatpush1.bf16.msra.mxu0 %v798
        %1063 = vmatprep.subr.bf16.mxu0 0
        %1064 = vmatpush1.bf16.msra.mxu0 %v797
        %1065 = vmatprep.subr.bf16.mxu0 0
        %1066 = vmatpush1.bf16.msra.mxu0 %v796
        %1067 = vmatprep.subr.bf16.mxu0 0
        %1068 = vmatpush1.bf16.msra.mxu0 %v795
        %1069 = vmatprep.subr.bf16.mxu0 0
        %1070 = vmatpush2.bf16.msra.mxu0 %v810
        %1071 = vmatprep.subr.bf16.mxu0 0
        %1072 = vmatpush2.bf16.msra.mxu0 %v809
        %1073 = vmatprep.subr.bf16.mxu0 0
        %1074 = vmatpush2.bf16.msra.mxu0 %v808
        %1075 = vmatprep.subr.bf16.mxu0 0
        %1076 = vmatpush2.bf16.msra.mxu0 %v807
        %1077 = vmatprep.subr.bf16.mxu0 0
        %1078 = vmatpush2.bf16.msra.mxu0 %v806
        %1079 = vmatprep.subr.bf16.mxu0 0
        %1080 = vmatpush2.bf16.msra.mxu0 %v805
        %1081 = vmatprep.subr.bf16.mxu0 0
        %1082 = vmatpush2.bf16.msra.mxu0 %v804
        %1083 = vmatprep.subr.bf16.mxu0 0
        %1084 = vmatpush2.bf16.msra.mxu0 %v803
        %1085 = vmatprep.mubr.bf16.mxu0 %v480
        %1086 = vmatmul.mubr.bf16.gmra.mxu0 %v479
        %v1087 = vpop.f32.mrf.mxu0
        %v1088 = vadd.f32 %v991, %v1087
        %v1089 = vpop.f32.mrf.mxu0
        %v1090 = vpop.f32.mrf.mxu0
        %v1091 = vadd.f32 %v994, %v1090
        %v1092 = vpop.f32.mrf.mxu0
        %1093 = vmatprep.mubr.bf16.mxu0 %v486
        %1094 = vmatmul.mubr.bf16.gmra.mxu0 %v485
        %v1095 = vpop.f32.mrf.mxu0
        %v1096 = vadd.f32 %v999, %v1095
        %v1097 = vpop.f32.mrf.mxu0
        %v1098 = vpop.f32.mrf.mxu0
        %v1099 = vadd.f32 %v1002, %v1098
        %v1100 = vpop.f32.mrf.mxu0
        %1101 = vmatprep.mubr.bf16.mxu0 %v492
        %1102 = vmatmul.mubr.bf16.gmra.mxu0 %v491
        %v1103 = vpop.f32.mrf.mxu0
        %v1104 = vadd.f32 %v1007, %v1103
        %v1105 = vpop.f32.mrf.mxu0
        %v1106 = vpop.f32.mrf.mxu0
        %v1107 = vadd.f32 %v1010, %v1106
        %v1108 = vpop.f32.mrf.mxu0
        %1109 = vmatprep.mubr.bf16.mxu0 %v498
        %1110 = vmatmul.mubr.bf16.gmra.mxu0 %v497
        %v1111 = vpop.f32.mrf.mxu0
        %v1112 = vadd.f32 %v1015, %v1111
        %v1113 = vpop.f32.mrf.mxu0
        %v1114 = vpop.f32.mrf.mxu0
        %v1115 = vadd.f32 %v1018, %v1114
        %v1116 = vpop.f32.mrf.mxu0
        %1117 = vmatprep.mubr.bf16.mxu0 %v504
        %1118 = vmatmul.mubr.bf16.gmra.mxu0 %v503
        %v1119 = vpop.f32.mrf.mxu0
        %v1120 = vadd.f32 %v1023, %v1119
        %v1121 = vpop.f32.mrf.mxu0
        %v1122 = vpop.f32.mrf.mxu0
        %v1123 = vadd.f32 %v1026, %v1122
        %v1124 = vpop.f32.mrf.mxu0
        %1125 = vmatprep.mubr.bf16.mxu0 %v510
        %1126 = vmatmul.mubr.bf16.gmra.mxu0 %v509
        %v1127 = vpop.f32.mrf.mxu0
        %v1128 = vadd.f32 %v1031, %v1127
        %v1129 = vpop.f32.mrf.mxu0
        %v1130 = vpop.f32.mrf.mxu0
        %v1131 = vadd.f32 %v1034, %v1130
        %v1132 = vpop.f32.mrf.mxu0
        %1133 = vmatprep.mubr.bf16.mxu0 %v516
        %1134 = vmatmul.mubr.bf16.gmra.mxu0 %v515
        %v1135 = vpop.f32.mrf.mxu0
        %v1136 = vadd.f32 %v1039, %v1135
        %v1137 = vpop.f32.mrf.mxu0
        %v1138 = vpop.f32.mrf.mxu0
        %v1139 = vadd.f32 %v1042, %v1138
        %v1140 = vpop.f32.mrf.mxu0
        %1141 = vmatprep.mubr.bf16.mxu0 %v522
        %1142 = vmatmul.mubr.bf16.gmra.mxu0 %v521
        %v1143 = vpop.f32.mrf.mxu0
        %v1144 = vadd.f32 %v1047, %v1143
        %v1145 = vpop.f32.mrf.mxu0
        %v1146 = vpop.f32.mrf.mxu0
        %v1147 = vadd.f32 %v1050, %v1146
        %v1148 = vpop.f32.mrf.mxu0
        %1149 = vdwg.mxu0
        %v1150 = vpack.c.bf16 %v1091, %v1088
        %v1151 = vpack.c.bf16 %v1099, %v1096
        %v1152 = vpack.c.bf16 %v1107, %v1104
        %v1153 = vpack.c.bf16 %v1115, %v1112
        %v1154 = vpack.c.bf16 %v1123, %v1120
        %v1155 = vpack.c.bf16 %v1131, %v1128
        %v1156 = vpack.c.bf16 %v1139, %v1136
        %v1157 = vpack.c.bf16 %v1147, %v1144
        %v1166 = vunpack.c.l.b16 %v1150
        %v1167 = vunpack.c.h.b16 %v1150
        %v1168 = vunpack.c.l.b16 %v1151
        %v1169 = vunpack.c.h.b16 %v1151
        %v1170 = vunpack.c.l.b16 %v1152
        %v1171 = vunpack.c.h.b16 %v1152
        %v1172 = vunpack.c.l.b16 %v1153
        %v1173 = vunpack.c.h.b16 %v1153
        %v1174 = vunpack.c.l.b16 %v1154
        %v1175 = vunpack.c.h.b16 %v1154
        %v1176 = vunpack.c.l.b16 %v1155
        %v1177 = vunpack.c.h.b16 %v1155
        %v1178 = vunpack.c.l.b16 %v1156
        %v1179 = vunpack.c.h.b16 %v1156
        %v1180 = vunpack.c.l.b16 %v1157
        %v1181 = vunpack.c.h.b16 %v1157
        %v1182 = vpack.c.b16 %v1166, %v1166
        %v1183 = vpack.c.b16 %v1167, %v1167
        %v1184 = vpack.c.b16 %v1168, %v1168
        %v1185 = vpack.c.b16 %v1169, %v1169
        %v1186 = vpack.c.b16 %v1170, %v1170
        %v1187 = vpack.c.b16 %v1171, %v1171
        %v1188 = vpack.c.b16 %v1172, %v1172
        %v1189 = vpack.c.b16 %v1173, %v1173
        %v1190 = vpack.c.b16 %v1174, %v1174
        %v1191 = vpack.c.b16 %v1175, %v1175
        %v1192 = vpack.c.b16 %v1176, %v1176
        %v1193 = vpack.c.b16 %v1177, %v1177
        %v1194 = vpack.c.b16 %v1178, %v1178
        %v1195 = vpack.c.b16 %v1179, %v1179
        %v1196 = vpack.c.b16 %v1180, %v1180
        %v1197 = vpack.c.b16 %v1181, %v1181
        %1214 = vst [vmem:[%s166] sm:$0xf] %v1182
        %1215 = vst [vmem:[%s166 + $0x4] sm:$0xf] %v1183
        %1216 = vst [vmem:[%s166 + $0x8] sm:$0xf] %v1184
        %1217 = vst [vmem:[%s166 + $0xc] sm:$0xf] %v1185
        %1218 = vst [vmem:[%s166 + $0x10] sm:$0xf] %v1186
        %1219 = vst [vmem:[%s166 + $0x14] sm:$0xf] %v1187
        %1220 = vst [vmem:[%s166 + $0x18] sm:$0xf] %v1188
        %1221 = vst [vmem:[%s166 + $0x1c] sm:$0xf] %v1189
        %1222 = vst [vmem:[%s166 + $0x20] sm:$0xf] %v1190
        %1223 = vst [vmem:[%s166 + $0x24] sm:$0xf] %v1191
        %1224 = vst [vmem:[%s166 + $0x28] sm:$0xf] %v1192
        %1225 = vst [vmem:[%s166 + $0x2c] sm:$0xf] %v1193
        %1226 = vst [vmem:[%s166 + $0x30] sm:$0xf] %v1194
        %1227 = vst [vmem:[%s166 + $0x34] sm:$0xf] %v1195
        %1228 = vst [vmem:[%s166 + $0x38] sm:$0xf] %v1196
        %1229 = vst [vmem:[%s166 + $0x3c] sm:$0xf] %v1197
        %s1230 = sand.u32 %s93, 1
        %s1231 = scalar_lea.sflag [#allocation3], %s1230
        %s1232 = sand.u32 %s93, 1
        %s1233 = smul.addr %s1232, 64
        %s1234 = scalar_lea.vmem [#allocation2], %s1233
        // Predicated region
        $region33: #{patch_embed.2} parent=31 // pred_check
          %p1235 = pneg %p103
        $region34: #{patch_embed.2} parent=31 // pred_check_branch
          %1237 = sbr.rel (%p1235) target = $region36
        $region35: #{patch_embed.2} parent=31 // pred_region
          %s1238 = smul.u32 16, %s17
          %s1240 = ssub.s32 1024, 1024
          %1241 = vsyncadd %s1231, %s1240
          %s1242 = smul.addr %s1238, 64
          %s1243 = scalar_lea.hbm %s3, %s1242
          %s1244 = sshll.u32 %s1234, 4
          %s1245 = int_to_ptr.vmem [resolvable:$true] %s1244
          %1250 = dma.vmem_to_hbm [thread:$0]  %s1245, 1024, %s1243, %s1231, 64, 64, 4
        $region36: #{patch_embed.2} parent=31 // pred_fallthru
          _
      $region32: #{patch_embed.2} parent=5 // pred_fallthru
        _
      %p1251 = scmp.le.s32.totalorder 2, %s12
      // Predicated region
      $region37: #{patch_embed.2} parent=5 // pred_check
        %p1252 = pneg %p1251
      $region38: #{patch_embed.2} parent=5 // pred_check_branch
        %1254 = sbr.rel (%p1252) target = $region40
      $region39: #{patch_embed.2} parent=5 // pred_region
        %s1255 = ssub.s32 %s12, 2
        // Predicated region
        $region41: #{patch_embed.2} parent=39 // pred_check
          %p1256 = pneg %p109
        $region42: #{patch_embed.2} parent=39 // pred_check_branch
          %1258 = sbr.rel (%p1256) target = $region44
        $region43: #{patch_embed.2} parent=39 // pred_region
          %s1259 = sand.u32 %s94, 1
          %s1260 = scalar_lea.sflag [#allocation3], %s1259
          %s1261 = sand.u32 %s94, 1
          %s1262 = smul.addr %s1261, 64
          %s1263 = scalar_lea.vmem [#allocation2], %s1262
          %1264 = dma.done %s1260, 1024
        $region44: #{patch_embed.2} parent=39 // pred_fallthru
          _
      $region40: #{patch_embed.2} parent=5 // pred_fallthru
        _
    $region6: #{patch_embed.2} parent=1 // loop_footer
      %s16 = sadd.s32 1, %s12
    $region7: #{patch_embed.2} parent=1 // loop_footer_branch
      %11 = sbr.rel target = $region3
    $region8: #{patch_embed.2} parent=1 // loop_exit
      _
    %1265 = vsyncpa [#allocation3], 1
    %s1266 = scalar_lea.sflag [#allocation3], 1
    %1267 = vsyncpa %s1266, 1

</llo_original>
